<compile_context>
chip_gen: v6e
topology: v6e:2x2x1
jax: 0.10.0
libtpu: 0.0.40
codegen_flags: <defaults>
</compile_context>

<pallas_src>
import jax
import jax.numpy as jnp
from jax.experimental import pallas as pl
from jax.experimental.pallas import tpu as pltpu

# ogb.utils.features.get_atom_feature_dims() values, hardcoded so the script is
# self-contained (atomic_num, chirality, degree, formal_charge, numH,
# radical_e, hybridization, is_aromatic, is_in_ring).
ATOM_FEATURE_DIMS = [119, 4, 12, 12, 10, 6, 6, 2, 2]

# VMEM policy: cap the double-buffered in+out tile working set well under the
# 32 MiB scoped limit we request (valid on v5e/v6e/v7x; v7x physical = 64 MiB).
_VMEM_LIMIT_BYTES = 32 * 1024 * 1024
_VMEM_IO_BUDGET_BYTES = 24 * 1024 * 1024
# Only split a single-block input into >=2 grid steps (for v7x dual-TC
# bandwidth) if each resulting step still moves enough rows to amortize the
# ~0.35 us fixed per-step pipeline overhead.
_MEGACORE_SPLIT_MIN_ROWS = 2048


def compute_feature_dims(minimal_sized_encodings=True):
    if minimal_sized_encodings:
        max_feat_dim_vals = [16, 2, 6, 6, 4, 0, 5, 1, 1]
    else:
        max_feat_dim_vals = [float("inf")] * 10
    feature_dims = [
        int(min(d, max_feat_dim_vals[i] + 1)) for i, d in enumerate(ATOM_FEATURE_DIMS)
    ]
    cum = [sum(feature_dims[:i]) for i in range(len(feature_dims) + 1)]
    return feature_dims, cum


def xavier_uniform(key, out_dim, in_dim, dtype=jnp.float32):
    # matches torch.nn.init.xavier_uniform_ bound for a [out, in] weight
    a = (6.0 / (in_dim + out_dim)) ** 0.5
    return jax.random.uniform(key, (out_dim, in_dim), dtype=dtype, minval=-a, maxval=a)


def init_params(key, emb_dim, minimal_sized_encodings=True):
    """Build per-group Linear weights, the fused weight, and the packed
    block-diagonal weight (precomputed once here, NOT per forward call)."""
    feature_dims, cum = compute_feature_dims(minimal_sized_encodings)
    keys = jax.random.split(key, len(feature_dims))
    weights = [xavier_uniform(k, emb_dim, d) for k, d in zip(keys, feature_dims)]
    # Fuse:  sum_i Linear_i(x[:, lo:hi])  ==  x @ concat(W_i, axis=1).T
    w = jnp.concatenate(weights, axis=1).T.astype(jnp.float32)   # [total_dim, emb_dim]
    pack = 128 // emb_dim if (emb_dim < 128 and 128 % emb_dim == 0) else 1
    w_packed = (
        jax.scipy.linalg.block_diag(*([w] * pack)).astype(jnp.float32)
        if pack > 1 else None
    )                                                            # [pack*F, 128]
    params = {"w": w, "w_packed": w_packed}
    return params, weights, cum


# ---------------- Pallas kernel ----------------

def atom_encoder_kernel(x_ref, w_ref, o_ref):
    # One MXU matmul per node-row tile: [tile, K] @ [K, M] -> [tile, M].
    # x is consumed in its native dtype (cast on the VPU if needed) and the
    # matmul accumulates in f32; output is f32 like the PyTorch module.
    o_ref[...] = jnp.dot(
        x_ref[...].astype(jnp.float32),
        w_ref[...],
        preferred_element_type=jnp.float32,
    ).astype(o_ref.dtype)


def _choose_row_tile(n_rows, desired_rows, bytes_per_row):
    """Row tile: multiple of 16, VMEM-budgeted, and >=2 grid steps for large
    inputs so megacore (v7x dual-TC) can shard the row axis."""
    # Largest tile whose double-buffered in+out tiles fit the VMEM budget.
    vmem_rows = max(16, (_VMEM_IO_BUDGET_BYTES // (2 * bytes_per_row)) // 16 * 16)
    tile = max(16, (min(desired_rows, vmem_rows) // 16) * 16)
    if n_rows > tile:
        return tile
    # Whole input fits a single block.  Split into two grid steps only when
    # each half is still large enough to amortize per-step overhead.
    if n_rows >= 2 * _MEGACORE_SPLIT_MIN_ROWS:
        half = (n_rows + 1) // 2
        return ((half + 15) // 16) * 16
    return n_rows                       # tiny input: single full-extent block


def _row_tiled_matmul(x2, w2, desired_rows):
    """out = x2 @ w2 (f32 accumulate / f32 out), row-tiled with the small fused
    weight resident in VMEM across the whole grid."""
    n_rows, k = x2.shape
    k_w, m = w2.shape
    assert k == k_w
    bytes_per_row = k * x2.dtype.itemsize + m * 4          # input row + f32 output row
    tile = _choose_row_tile(n_rows, desired_rows, bytes_per_row)
    grid = pl.cdiv(n_rows, tile)
    cost = pl.CostEstimate(
        flops=2 * n_rows * k * m,
        transcendentals=0,
        bytes_accessed=n_rows * k * x2.dtype.itemsize + k * m * 4 + n_rows * m * 4,
    )
    return pl.pallas_call(
        atom_encoder_kernel,
        out_shape=jax.ShapeDtypeStruct((n_rows, m), jnp.float32),
        grid_spec=pltpu.PrefetchScalarGridSpec(
            num_scalar_prefetch=0,
            grid=(grid,),
            in_specs=[
                # node-row tile; K kept at full extent (no padding of the 50/200
                # feature axis).  Partial last block is masked by Pallas.
                pl.BlockSpec((tile, k), lambda i: (i, 0)),
                # fused weight, same block every step -> fetched once, resident.
                # (pipeline_mode=pl.Buffered(1) would drop the redundant second
                #  ~100 KiB buffer; skipped as it is negligible vs the tiles.)
                pl.BlockSpec((k, m), lambda i: (0, 0)),
            ],
            out_specs=pl.BlockSpec((tile, m), lambda i: (i, 0)),
        ),
        compiler_params=pltpu.CompilerParams(
            dimension_semantics=("parallel",),
            vmem_limit_bytes=_VMEM_LIMIT_BYTES,
        ),
        cost_estimate=cost,
    )(x2, w2)


def differentiable_atom_encoder(x, params, *, tile_nodes=32768):
    """x: [N, F] pre-one-hot float node features.  Returns [N, emb] float32
    (== sum_i Linear_i(x[:, lo_i:hi_i]), the PyTorch module's batch.x update)."""
    w = params["w"]                       # [F, emb] fused weight (f32)
    w_packed = params.get("w_packed", None)
    n, f = x.shape
    f_w, emb = w.shape
    assert f == f_w

    # Lane-dense output packing: fold `pack` nodes per stored row so every
    # output store is a full 128-lane slab instead of a masked partial store.
    pack = 128 // emb if (emb < 128 and 128 % emb == 0) else 1
    if pack > 1 and w_packed is None:
        # Fallback only; callers should precompute this once via init_params.
        w_packed = jax.scipy.linalg.block_diag(*([w] * pack)).astype(jnp.float32)

    if pack > 1:
        desired_rows = max(16, tile_nodes // pack)
        n_main = (n // pack) * pack
        if n_main == n:
            # Pure-bitcast path: reshape in / reshape out are free row-major views.
            x2 = x.reshape(n // pack, pack * f)
            out = _row_tiled_matmul(x2, w_packed, desired_rows)
            return out.reshape(n, emb)
        if n_main == 0:
            # Fewer than `pack` nodes: a single tiny dense matmul.
            return jnp.dot(x.astype(jnp.float32), w, preferred_element_type=jnp.float32)
        # Ragged N: keep the bulk on the lane-dense packed path and finish the
        # <= pack-1 leftover rows with a tiny dense matmul.  NOTE: the prefix
        # slice + concat cost extra passes over the data; the graph-batching
        # layer should pad N to a multiple of `pack` to hit the path above.
        x2 = x[:n_main].reshape(n_main // pack, pack * f)
        out_main = _row_tiled_matmul(x2, w_packed, desired_rows).reshape(n_main, emb)
        out_rem = jnp.dot(
            x[n_main:].astype(jnp.float32), w, preferred_element_type=jnp.float32
        )
        return jnp.concatenate([out_main, out_rem], axis=0)

    # emb >= 128 or emb does not divide 128: plain row-tiled matmul.
    return _row_tiled_matmul(x, w, max(16, tile_nodes))


# ---------------- reference (pure JAX, mirrors the PyTorch loop) ----------------

def reference_forward(x, weights, cum):
    enc = 0
    for i, (lo, hi) in enumerate(zip(cum[:-1], cum[1:])):
        enc = enc + x[:, lo:hi] @ weights[i].T
    return enc


if __name__ == "__main__":
    emb_dim = 32

    key = jax.random.PRNGKey(0)
    k_w, k_x = jax.random.split(key)

    params, weights, cum = init_params(k_w, emb_dim, minimal_sized_encodings=True)
    feature_dims, _ = compute_feature_dims(True)   # total feature dim = 50

    def make_x(key_feats, num_nodes):
        keys = jax.random.split(key_feats, len(feature_dims))
        cols = [
            jax.nn.one_hot(jax.random.randint(kf, (num_nodes,), 0, d), d, dtype=jnp.float32)
            for kf, d in zip(keys, feature_dims)
        ]
        return jnp.concatenate(cols, axis=1)       # [num_nodes, 50]

    encode = jax.jit(lambda xx: differentiable_atom_encoder(xx, params))

    # Exercise both the pure packed path (N % 4 == 0) and the ragged-N path.
    for num_nodes in (16, 19):
        x = make_x(jax.random.fold_in(k_x, num_nodes), num_nodes)
        out = jax.block_until_ready(encode(x))
        ref = reference_forward(x, weights, cum)
        assert out.shape == (num_nodes, emb_dim)
        assert out.dtype == jnp.float32
        assert jnp.allclose(out, ref, atol=2e-2, rtol=2e-2), f"mismatch vs reference (N={num_nodes})"

    print("KERNEL_OK")
</pallas_src>

<mosaic_0001>
module attributes {stable_mosaic.version = 11 : i64} {
  func.func @atom_encoder_kernel(%arg0: i32, %arg1: memref<4x200xf32, #tpu.memory_space<vmem>>, %arg2: memref<200x128xf32, #tpu.memory_space<vmem>>, %arg3: memref<4x128xf32, #tpu.memory_space<vmem>>) attributes {dimension_semantics = [#tpu.dimension_semantics<parallel>], iteration_bounds = array<i64: 1>, scalar_prefetch = 0 : i64, scratch_operands = 0 : i64, tpu.core_type = #tpu.core_type<tc>, window_params = [{transform_indices = @transform_0, window_bounds = array<i64: 4, 200>}, {pipeline_mode = #tpu.pipeline_mode<synchronous>, transform_indices = @transform_1, window_bounds = array<i64: 200, 128>}, {transform_indices = @transform_2, window_bounds = array<i64: 4, 128>}]} {
    %c0 = arith.constant 0 : index
    %c0_0 = arith.constant 0 : index
    %0 = vector.load %arg1[%c0, %c0_0] : memref<4x200xf32, #tpu.memory_space<vmem>>, vector<4x200xf32>
    %c0_1 = arith.constant 0 : index
    %c0_2 = arith.constant 0 : index
    %1 = vector.load %arg2[%c0_1, %c0_2] : memref<200x128xf32, #tpu.memory_space<vmem>>, vector<200x128xf32>
    %cst = arith.constant dense<0.000000e+00> : vector<4x128xf32>
    %2 = tpu.matmul %0, %1, %cst {dimension_numbers = #tpu.dot_dimension_numbers<[1], [0], [0], [1], [0, 0, 1, 1], [], []>} : vector<4x200xf32>, vector<200x128xf32>, vector<4x128xf32> -> vector<4x128xf32>
    %c0_3 = arith.constant 0 : index
    %c0_4 = arith.constant 0 : index
    %3 = vector.load %arg3[%c0_3, %c0_4] : memref<4x128xf32, #tpu.memory_space<vmem>>, vector<4x128xf32>
    tpu.vector_store %arg3[%c0_3, %c0_4], %2 {strides = array<i32>} : memref<4x128xf32, #tpu.memory_space<vmem>>, vector<4x128xf32>,
    return
  }
  func.func @transform_0(%arg0: i32) -> (i32, i32) {
    %c0_i32 = arith.constant 0 : i32
    %c0_i32_0 = arith.constant 0 : i32
    return %arg0, %c0_i32 : i32, i32
  }
  func.func @transform_1(%arg0: i32) -> (i32, i32) {
    %c0_i32 = arith.constant 0 : i32
    %c0_i32_0 = arith.constant 0 : i32
    %c0_i32_1 = arith.constant 0 : i32
    return %c0_i32, %c0_i32_0 : i32, i32
  }
  func.func @transform_2(%arg0: i32) -> (i32, i32) {
    %c0_i32 = arith.constant 0 : i32
    %c0_i32_0 = arith.constant 0 : i32
    return %arg0, %c0_i32 : i32, i32
  }
}

</mosaic_0001>

<llo_original>
// kernel: _lambda_.1
$region0: #{_lambda_.1}
  #allocation0 [shape = 'u32[]', space=smem, size = 0x4, offset = 0x4, fixed_abs, tag = 'smem constant byte address 0x4 - core index']
  #allocation1 [shape = 'u32[144,128]{1,0:T(1,128)}', space=vmem, size = 0x12000, scoped, tag = 'internal scratch']
  %s0 = inlined_call_operand.vmem [shape: f32[4,200], index: 0, kind: input, shape index: {}]
  %s1 = inlined_call_operand.hbm [shape: f32[200,128], index: 1, kind: input, shape index: {}]
  %s2 = inlined_call_operand.vmem [shape: f32[4,128], index: 2, kind: output, shape index: {}]
  %s3 = sld [smem:[#allocation0]]
  $region22: #{_lambda_.1} parent=0
    _
  %s5 = ssub.s32 1, %s3
  %s6 = scalar_select 0, %s5, %s3
  $region1: #{_lambda_.1} parent=0
    #allocation2 [shape = 'u8[102400]{0}', space=vmem, size = 0x19000, scoped, tag = 'input window, operand 1, single buffered']
    #allocation3 [shape = 's32[1]{0}', space=sflag, size = 0x4, scoped, tag = 'scoped memory for _lambda_.1']
    %7 = vsyncpa [#allocation3], 0
    // Predicated region
    $region2: #{_lambda_.1} parent=1 // pred_check
      _
    $region3: #{_lambda_.1} parent=1 // pred_check_branch
      %9 = sbr.rel (0) target = $region5
    $region4: #{_lambda_.1} parent=1 // pred_region
      _
    $region5: #{_lambda_.1} parent=1 // pred_fallthru
      _
    // Predicated region
    $region6: #{_lambda_.1} parent=1 // pred_check
      _
    $region7: #{_lambda_.1} parent=1 // pred_check_branch
      %11 = sbr.rel (0) target = $region9
    $region8: #{_lambda_.1} parent=1 // pred_region
      %s13 = ssub.s32 3200, 3200
      %14 = vsyncadd [#allocation3], %s13
      %s15 = sshll.u32 [#allocation2], 4
      %s16 = int_to_ptr.vmem [resolvable:$true] %s15
      %21 = dma.hbm_to_vmem [thread:$0]  %s1, 3200, %s16, [#allocation3], 128, 128, 8
    $region9: #{_lambda_.1} parent=1 // pred_fallthru
      _
    // Predicated region
    $region10: #{_lambda_.1} parent=1 // pred_check
      _
    $region11: #{_lambda_.1} parent=1 // pred_check_branch
      %23 = sbr.rel (0) target = $region13
    $region12: #{_lambda_.1} parent=1 // pred_region
      %24 = dma.done [#allocation3], 3200
    $region13: #{_lambda_.1} parent=1 // pred_fallthru
      _
    %v25 = vld [vmem:[%s0] sm:$0xff]
    %v26 = vld [vmem:[#allocation2] sm:$0xff]
    %v27 = vld [vmem:[#allocation2 + $0x8] sm:$0xff]
    %v28 = vld [vmem:[#allocation2 + $0x10] sm:$0xff]
    %v29 = vld [vmem:[#allocation2 + $0x18] sm:$0xff]
    %v30 = vld [vmem:[#allocation2 + $0x20] sm:$0xff]
    %v31 = vld [vmem:[#allocation2 + $0x28] sm:$0xff]
    %v32 = vld [vmem:[#allocation2 + $0x30] sm:$0xff]
    %v33 = vld [vmem:[#allocation2 + $0x38] sm:$0xff]
    %v34 = vld [vmem:[#allocation2 + $0x40] sm:$0xff]
    %v35 = vld [vmem:[#allocation2 + $0x48] sm:$0xff]
    %v36 = vld [vmem:[#allocation2 + $0x50] sm:$0xff]
    %v37 = vld [vmem:[#allocation2 + $0x58] sm:$0xff]
    %v38 = vld [vmem:[#allocation2 + $0x60] sm:$0xff]
    %v39 = vld [vmem:[#allocation2 + $0x68] sm:$0xff]
    %v40 = vld [vmem:[#allocation2 + $0x70] sm:$0xff]
    %v41 = vld [vmem:[#allocation2 + $0x78] sm:$0xff]
    %v42 = vld [vmem:[#allocation2 + $0x80] sm:$0xff]
    %v43 = vld [vmem:[#allocation2 + $0x88] sm:$0xff]
    %v44 = vld [vmem:[#allocation2 + $0x90] sm:$0xff]
    %v45 = vld [vmem:[#allocation2 + $0x98] sm:$0xff]
    %v46 = vld [vmem:[#allocation2 + $0xa0] sm:$0xff]
    %v47 = vld [vmem:[#allocation2 + $0xa8] sm:$0xff]
    %v48 = vld [vmem:[#allocation2 + $0xb0] sm:$0xff]
    %v49 = vld [vmem:[#allocation2 + $0xb8] sm:$0xff]
    %v50 = vld [vmem:[#allocation2 + $0xc0] sm:$0xff]
    %v52 = vcombine.high %v25, %v25
    %vm53 = vcmask 588800
    %v54 = vsel %vm53, %v52, 0
    %56 = vmatprep.subr.mxu0 0.0
    %57 = vmatpush1.msra.mxu0 %v41
    %58 = vmatprep.subr.mxu0 0.0
    %59 = vmatpush1.msra.mxu0 %v40
    %60 = vmatprep.subr.mxu0 0.0
    %61 = vmatpush1.msra.mxu0 %v39
    %62 = vmatprep.subr.mxu0 0.0
    %63 = vmatpush1.msra.mxu0 %v38
    %64 = vmatprep.subr.mxu0 0.0
    %65 = vmatpush1.msra.mxu0 %v37
    %66 = vmatprep.subr.mxu0 0.0
    %67 = vmatpush1.msra.mxu0 %v36
    %68 = vmatprep.subr.mxu0 0.0
    %69 = vmatpush1.msra.mxu0 %v35
    %70 = vmatprep.subr.mxu0 0.0
    %71 = vmatpush1.msra.mxu0 %v34
    %72 = vmatprep.subr.mxu0 0.0
    %73 = vmatpush1.msra.mxu0 %v33
    %74 = vmatprep.subr.mxu0 0.0
    %75 = vmatpush1.msra.mxu0 %v32
    %76 = vmatprep.subr.mxu0 0.0
    %77 = vmatpush1.msra.mxu0 %v31
    %78 = vmatprep.subr.mxu0 0.0
    %79 = vmatpush1.msra.mxu0 %v30
    %80 = vmatprep.subr.mxu0 0.0
    %81 = vmatpush1.msra.mxu0 %v29
    %82 = vmatprep.subr.mxu0 0.0
    %83 = vmatpush1.msra.mxu0 %v28
    %84 = vmatprep.subr.mxu0 0.0
    %85 = vmatpush1.msra.mxu0 %v27
    %86 = vmatprep.subr.mxu0 0.0
    %87 = vmatpush1.msra.mxu0 %v26
    %88 = vmatprep.subr.mxu0 0.0
    %89 = vmatpush2.msra.mxu0 0.0
    %90 = vmatprep.subr.mxu0 0.0
    %91 = vmatpush2.msra.mxu0 0.0
    %92 = vmatprep.subr.mxu0 0.0
    %93 = vmatpush2.msra.mxu0 0.0
    %94 = vmatprep.subr.mxu0 0.0
    %95 = vmatpush2.msra.mxu0 0.0
    %96 = vmatprep.subr.mxu0 0.0
    %97 = vmatpush2.msra.mxu0 0.0
    %98 = vmatprep.subr.mxu0 0.0
    %99 = vmatpush2.msra.mxu0 0.0
    %100 = vmatprep.subr.mxu0 0.0
    %101 = vmatpush2.msra.mxu0 0.0
    %102 = vmatprep.subr.mxu0 0.0
    %103 = vmatpush2.msra.mxu0 %v50
    %104 = vmatprep.subr.mxu0 0.0
    %105 = vmatpush2.msra.mxu0 %v49
    %106 = vmatprep.subr.mxu0 0.0
    %107 = vmatpush2.msra.mxu0 %v48
    %108 = vmatprep.subr.mxu0 0.0
    %109 = vmatpush2.msra.mxu0 %v47
    %110 = vmatprep.subr.mxu0 0.0
    %111 = vmatpush2.msra.mxu0 %v46
    %112 = vmatprep.subr.mxu0 0.0
    %113 = vmatpush2.msra.mxu0 %v45
    %114 = vmatprep.subr.mxu0 0.0
    %115 = vmatpush2.msra.mxu0 %v44
    %116 = vmatprep.subr.mxu0 0.0
    %117 = vmatpush2.msra.mxu0 %v43
    %118 = vmatprep.subr.mxu0 0.0
    %119 = vmatpush2.msra.mxu0 %v42
    %120 = vmatprep.mubr.f32.mxu0 %v54
    %121 = vmatmul.mubr.f32.gmra.mxu0 %v25
    %v122 = vpop.f32.mrf.mxu0
    %v123 = vadd.f32 0.0, %v122
    %v124 = vpop.f32.mrf.mxu0
    %125 = vdwg.mxu0
    %126 = vst [vmem:[%s2] sm:$0xf] %v123
    // Predicated region
    $region14: #{_lambda_.1} parent=1 // pred_check
      _
    $region15: #{_lambda_.1} parent=1 // pred_check_branch
      %128 = sbr.rel (0) target = $region17
    $region16: #{_lambda_.1} parent=1 // pred_region
      _
    $region17: #{_lambda_.1} parent=1 // pred_fallthru
      _
    // Predicated region
    $region18: #{_lambda_.1} parent=1 // pred_check
      _
    $region19: #{_lambda_.1} parent=1 // pred_check_branch
      %130 = sbr.rel (0) target = $region21
    $region20: #{_lambda_.1} parent=1 // pred_region
      _
    $region21: #{_lambda_.1} parent=1 // pred_fallthru
      _
    %131 = vsyncpa [#allocation3], 1

</llo_original>
